<compile_context>
chip_gen: v6e
topology: v6e:2x2x1
jax: 0.10.0
libtpu: 0.0.40
codegen_flags: <defaults>
</compile_context>

<pallas_src>
import jax
import jax.numpy as jnp
from jax import lax
from jax.experimental import pallas as pl
from jax.experimental.pallas import tpu as pltpu


def _network_kernel(x_ref, w_ref, out_ref):
    B, F = x_ref.shape
    x = x_ref[...]                                                    # (B, F) f32

    # Stage Linear1 weights early: no data dependency on x, bf16 for a single MXU pass.
    # TODO(synk): verify from the bundle dump that Mosaic hoists the MXU RHS push ahead of
    # the bilinear/BN chain; if not, drive it with pltpu.matmul_push_rhs/acc_lhs/pop.
    w1_bf = w_ref[F:2 * F, :].astype(jnp.bfloat16)                    # (F, Hp)

    # ---- Bilinear(x, x): q[b] = x[b] @ Wq @ x[b]^T  (bias bq folds out under train-BN) ----
    xw = jnp.dot(x, w_ref[0:F, 0:F], preferred_element_type=jnp.float32)   # (B, F) f32
    q = jnp.sum(xw * x, axis=-1, keepdims=True)                       # (B, 1)
    z = x + q                                                         # (B, F)

    # ---- BatchNorm1d, training-mode batch stats (biased var, eps=1e-5); affine pre-folded.
    # Two independent sublane reductions (no serialized mean -> subtract -> square -> mean).
    inv_b = 1.0 / B
    m1 = jnp.sum(z, axis=0, keepdims=True) * inv_b                    # E[z]    (1, F)
    m2 = jnp.sum(z * z, axis=0, keepdims=True) * inv_b                # E[z^2]  (1, F)
    var = m2 - m1 * m1
    zn = (z - m1) * lax.rsqrt(var + 1e-5)                             # (B, F) f32

    # ---- Linear(F, Hp) (gamma/beta folded) + exact sigmoid via tanh (one EUP op/elem) ----
    h = jnp.dot(zn.astype(jnp.bfloat16), w1_bf,
                preferred_element_type=jnp.float32)                   # (B, Hp) f32
    h = h + w_ref[2 * F:2 * F + B, :]                                 # b1, pre-replicated rows
    h = 0.5 + 0.5 * jnp.tanh(0.5 * h)                                 # exact sigmoid

    # ---- Linear(Hp, 1): VPU mul + lane reduce (no degenerate N=1 MXU pass).
    # b2 is already folded into the replicated w2 row (padded slot holds 2*b2, h there = 0.5).
    o = jnp.sum(h * w_ref[2 * F + B:2 * F + 2 * B, :], axis=-1, keepdims=True)
    out_ref[...] = jnp.abs(o)                                         # (B, 1)


def prepare_params(wq, bq, gamma, beta, w1, b1, w2, b2, batch, hidden_pad=512):
    """One-time weight transform into a single f32 slab (do NOT run per call in a hot loop).

    Slab layout (rows, all Hp=hidden_pad lanes wide):
      [0      , F      )  Wq, zero-padded to Hp lanes
      [F      , 2F     )  W1 with BatchNorm gamma folded in, hidden zero-padded to Hp
      [2F     , 2F+B   )  b1 + beta@W1, replicated across B rows (no sublane broadcast needed)
      [2F+B   , 2F+2B  )  w2 row (zero-padded), with 2*b2 stored at padded slot H, replicated
    """
    F, H = w1.shape
    Hp = hidden_pad
    assert H < Hp, "need at least one padded hidden slot to fold b2 into"
    b2s = jnp.reshape(b2, ()).astype(jnp.float32)

    # Fold BatchNorm affine into Linear1: (zn*g + b) @ W1 + b1 = zn @ (g^T * W1) + (b@W1 + b1)
    w1f = (w1 * gamma.reshape(F, 1)).astype(jnp.float32)
    b1f = (b1.reshape(1, H) + beta.reshape(1, F) @ w1).astype(jnp.float32)

    wqp = jnp.zeros((F, Hp), jnp.float32).at[:, :F].set(wq.astype(jnp.float32))
    w1p = jnp.zeros((F, Hp), jnp.float32).at[:, :H].set(w1f)
    b1p = jnp.zeros((1, Hp), jnp.float32).at[:, :H].set(b1f)
    # Padded hidden slots see exactly 0 pre-activation -> sigmoid = 0.5 exactly, so putting
    # 2*b2 in the w2 row at slot H makes the lane reduce contribute 0.5 * 2*b2 = b2.
    w2row = (jnp.zeros((1, Hp), jnp.float32)
             .at[:, :H].set(w2.reshape(1, H).astype(jnp.float32))
             .at[:, H].set(2.0 * b2s))

    slab = jnp.concatenate(
        [wqp, w1p, jnp.tile(b1p, (batch, 1)), jnp.tile(w2row, (batch, 1))], axis=0)
    # bq is intentionally dropped: it shifts every element of z by the same constant, which
    # training-mode batch-mean subtraction removes exactly. (NOT valid for eval-mode BN.)
    return slab                                                        # (2F + 2B, Hp) f32


def network_forward(x, slab):
    B, F = x.shape
    Hp = slab.shape[1]
    vmem = pl.BlockSpec(memory_space=pltpu.MemorySpace.VMEM)
    cost = pl.CostEstimate(
        flops=2 * B * F * F + 2 * B * F * Hp + 12 * B * F + 8 * B * Hp,
        transcendentals=B * Hp,
        bytes_accessed=4 * (x.size + slab.size + B),
    )
    # Single grid-less invocation: total footprint < 0.3 MB, fits VMEM on v5e/v6e/v7x.
    # Deliberately NOT tiled / split across v7x cores: grid-step overhead would exceed the
    # compute it saves at B=8 / Hp=512.
    return pl.pallas_call(
        _network_kernel,
        out_shape=jax.ShapeDtypeStruct((B, 1), jnp.float32),
        in_specs=[vmem, vmem],
        out_specs=vmem,
        cost_estimate=cost,
    )(x, slab)


def reference_forward(x, wq, bq, gamma, beta, w1, b1, w2, b2):
    """Pure-JAX reference with the full original (unfolded, unpadded) parameters."""
    q = jnp.sum((x @ wq) * x, axis=-1, keepdims=True) + bq
    z = x + q
    mean = jnp.mean(z, axis=0, keepdims=True)
    var = jnp.mean((z - mean) ** 2, axis=0, keepdims=True)
    zn = (z - mean) / jnp.sqrt(var + 1e-5) * gamma + beta
    h = jax.nn.sigmoid(zn @ w1 + b1)
    return jnp.abs(h @ w2 + b2)


if __name__ == "__main__":
    B, F, H = 8, 32, 500  # batch, n_of_features, hidden (module uses hidden=500)

    key = jax.random.PRNGKey(0)
    kx, kq, kbq, kg, kb, k1, kb1, k2, kb2 = jax.random.split(key, 9)

    x = jax.random.normal(kx, (B, F), dtype=jnp.float32)

    # Deterministic synthetic parameters (shapes match the PyTorch module, stored transposed
    # "right-multiply" style: (in_features, out_features)).
    wq = jax.random.normal(kq, (F, F), dtype=jnp.float32) * 0.05   # Bilinear weight (1,F,F) squeezed
    bq = jax.random.normal(kbq, (1, 1), dtype=jnp.float32) * 0.05  # Bilinear bias
    # Non-trivial gamma/beta so the BatchNorm-affine -> Linear1 fold is actually exercised.
    gamma = 1.0 + 0.1 * jax.random.normal(kg, (1, F), dtype=jnp.float32)
    beta = 0.1 * jax.random.normal(kb, (1, F), dtype=jnp.float32)
    w1 = jax.random.normal(k1, (F, H), dtype=jnp.float32) * 0.05   # Linear(F, 500), transposed
    b1 = jax.random.normal(kb1, (1, H), dtype=jnp.float32) * 0.05
    w2 = jax.random.normal(k2, (H, 1), dtype=jnp.float32) * 0.05   # Linear(500, 1), transposed
    b2 = jax.random.normal(kb2, (1, 1), dtype=jnp.float32) * 0.05

    slab = prepare_params(wq, bq, gamma, beta, w1, b1, w2, b2, batch=B)

    out = network_forward(x, slab)
    out = jax.block_until_ready(out)

    ref = reference_forward(x, wq, bq, gamma, beta, w1, b1, w2, b2)
    assert out.shape == (B, 1)
    # Sigmoid is now exact (tanh form); residual tolerance covers the bf16 MXU operands of
    # the Linear1 matmul (f32 accumulation).
    assert jnp.allclose(out, ref, atol=5e-3, rtol=5e-3), (out, ref)

    print("KERNEL_OK")
</pallas_src>

<mosaic_0001>
module attributes {stable_mosaic.version = 11 : i64} {
  func.func @_network_kernel(%arg0: memref<8x32xf32, #tpu.memory_space<vmem>>, %arg1: memref<80x512xf32, #tpu.memory_space<vmem>>, %arg2: memref<8x1xf32, #tpu.memory_space<vmem>>) attributes {dimension_semantics = [], scalar_prefetch = 0 : i64, scratch_operands = 0 : i64, tpu.core_type = #tpu.core_type<tc>} {
    %c0 = arith.constant 0 : index
    %c0_0 = arith.constant 0 : index
    %0 = vector.load %arg0[%c0, %c0_0] : memref<8x32xf32, #tpu.memory_space<vmem>>, vector<8x32xf32>
    %c32 = arith.constant 32 : index
    %c0_1 = arith.constant 0 : index
    %1 = vector.load %arg1[%c32, %c0_1] : memref<80x512xf32, #tpu.memory_space<vmem>>, vector<32x512xf32>
    %2 = arith.truncf %1 : vector<32x512xf32> to vector<32x512xbf16>
    %c0_2 = arith.constant 0 : index
    %c0_3 = arith.constant 0 : index
    %3 = vector.load %arg1[%c0_2, %c0_3] : memref<80x512xf32, #tpu.memory_space<vmem>>, vector<32x32xf32>
    %cst = arith.constant dense<0.000000e+00> : vector<8x32xf32>
    %4 = tpu.matmul %0, %3, %cst {dimension_numbers = #tpu.dot_dimension_numbers<[1], [0], [0], [1], [0, 0, 1, 1], [], []>} : vector<8x32xf32>, vector<32x32xf32>, vector<8x32xf32> -> vector<8x32xf32>
    %5 = arith.mulf %4, %0 : vector<8x32xf32>
    %cst_4 = arith.constant dense<0.000000e+00> : vector<8xf32>
    %6 = vector.multi_reduction <add>, %5, %cst_4 [1] : vector<8x32xf32> to vector<8xf32>
    %7 = vector.shape_cast %6 : vector<8xf32> to vector<8x1xf32>
    %8 = vector.broadcast %7 : vector<8x1xf32> to vector<8x32xf32>
    %9 = arith.addf %0, %8 : vector<8x32xf32>
    %cst_5 = arith.constant dense<0.000000e+00> : vector<32xf32>
    %10 = vector.multi_reduction <add>, %9, %cst_5 [0] : vector<8x32xf32> to vector<32xf32>
    %11 = vector.shape_cast %10 : vector<32xf32> to vector<1x32xf32>
    %cst_6 = arith.constant 1.250000e-01 : f32
    %12 = vector.broadcast %cst_6 : f32 to vector<1x32xf32>
    %13 = arith.mulf %11, %12 : vector<1x32xf32>
    %14 = arith.mulf %9, %9 : vector<8x32xf32>
    %cst_7 = arith.constant dense<0.000000e+00> : vector<32xf32>
    %15 = vector.multi_reduction <add>, %14, %cst_7 [0] : vector<8x32xf32> to vector<32xf32>
    %16 = vector.shape_cast %15 : vector<32xf32> to vector<1x32xf32>
    %cst_8 = arith.constant 1.250000e-01 : f32
    %17 = vector.broadcast %cst_8 : f32 to vector<1x32xf32>
    %18 = arith.mulf %16, %17 : vector<1x32xf32>
    %19 = arith.mulf %13, %13 : vector<1x32xf32>
    %20 = arith.subf %18, %19 : vector<1x32xf32>
    %21 = vector.broadcast %13 : vector<1x32xf32> to vector<8x32xf32>
    %22 = arith.subf %9, %21 : vector<8x32xf32>
    %cst_9 = arith.constant 9.99999974E-6 : f32
    %23 = vector.broadcast %cst_9 : f32 to vector<1x32xf32>
    %24 = arith.addf %20, %23 : vector<1x32xf32>
    %25 = math.rsqrt %24 : vector<1x32xf32>
    %26 = vector.broadcast %25 : vector<1x32xf32> to vector<8x32xf32>
    %27 = arith.mulf %22, %26 : vector<8x32xf32>
    %28 = arith.truncf %27 : vector<8x32xf32> to vector<8x32xbf16>
    %cst_10 = arith.constant dense<0.000000e+00> : vector<8x512xf32>
    %29 = tpu.matmul %28, %2, %cst_10 {dimension_numbers = #tpu.dot_dimension_numbers<[1], [0], [0], [1], [0, 0, 1, 1], [], []>} : vector<8x32xbf16>, vector<32x512xbf16>, vector<8x512xf32> -> vector<8x512xf32>
    %c64 = arith.constant 64 : index
    %c0_11 = arith.constant 0 : index
    %30 = vector.load %arg1[%c64, %c0_11] : memref<80x512xf32, #tpu.memory_space<vmem>>, vector<8x512xf32>
    %31 = arith.addf %29, %30 : vector<8x512xf32>
    %cst_12 = arith.constant 5.000000e-01 : f32
    %32 = vector.broadcast %cst_12 : f32 to vector<8x512xf32>
    %33 = arith.mulf %32, %31 : vector<8x512xf32>
    %34 = math.tanh %33 : vector<8x512xf32>
    %cst_13 = arith.constant 5.000000e-01 : f32
    %35 = vector.broadcast %cst_13 : f32 to vector<8x512xf32>
    %36 = arith.mulf %35, %34 : vector<8x512xf32>
    %cst_14 = arith.constant 5.000000e-01 : f32
    %37 = vector.broadcast %cst_14 : f32 to vector<8x512xf32>
    %38 = arith.addf %37, %36 : vector<8x512xf32>
    %c72 = arith.constant 72 : index
    %c0_15 = arith.constant 0 : index
    %39 = vector.load %arg1[%c72, %c0_15] : memref<80x512xf32, #tpu.memory_space<vmem>>, vector<8x512xf32>
    %40 = arith.mulf %38, %39 : vector<8x512xf32>
    %cst_16 = arith.constant dense<0.000000e+00> : vector<8xf32>
    %41 = vector.multi_reduction <add>, %40, %cst_16 [1] : vector<8x512xf32> to vector<8xf32>
    %42 = vector.shape_cast %41 : vector<8xf32> to vector<8x1xf32>
    %43 = math.absf %42 : vector<8x1xf32>
    %c0_17 = arith.constant 0 : index
    %c0_18 = arith.constant 0 : index
    %44 = vector.load %arg2[%c0_17, %c0_18] : memref<8x1xf32, #tpu.memory_space<vmem>>, vector<8x1xf32>
    tpu.vector_store %arg2[%c0_17, %c0_18], %43 {strides = array<i32>} : memref<8x1xf32, #tpu.memory_space<vmem>>, vector<8x1xf32>,
    return
  }
}

</mosaic_0001>

<llo_original>
// kernel: tpu_custom_call.1
$region0: #{tpu_custom_call.1}
  #allocation0 [shape = 'u32[]', space=smem, size = 0x4, offset = 0x4, fixed_abs, tag = 'smem constant byte address 0x4 - core index']
  #allocation1 [shape = 'u32[144,128]{1,0:T(1,128)}', space=vmem, size = 0x12000, scoped, tag = 'internal scratch']
  %s0 = inlined_call_operand.hbm [shape: f32[8,32], index: 0, kind: input, shape index: {}]
  %s1 = inlined_call_operand.hbm [shape: f32[80,512], index: 1, kind: input, shape index: {}]
  %s2 = inlined_call_operand.vmem [shape: f32[8,1], index: 2, kind: output, shape index: {}]
  %s3 = sld [smem:[#allocation0]]
  $region26: #{tpu_custom_call.1} parent=0
    _
  %s5 = ssub.s32 1, %s3
  %s6 = scalar_select 0, %s5, %s3
  $region1: #{tpu_custom_call.1} parent=0
    #allocation2 [shape = 'u8[4096]{0}', space=vmem, size = 0x1000, scoped, tag = 'input window, operand 0, single buffered']
    #allocation3 [shape = 's32[1]{0}', space=sflag, size = 0x4, scoped, tag = 'scoped memory for tpu_custom_call.1']
    #allocation4 [shape = 'u8[163840]{0}', space=vmem, size = 0x28000, scoped, tag = 'input window, operand 1, single buffered']
    #allocation5 [shape = 's32[1]{0}', space=sflag, size = 0x4, scoped, tag = 'scoped memory for tpu_custom_call.1']
    %7 = vsyncpa [#allocation3], 0
    %8 = vsyncpa [#allocation5], 0
    // Predicated region
    $region2: #{tpu_custom_call.1} parent=1 // pred_check
      _
    $region3: #{tpu_custom_call.1} parent=1 // pred_check_branch
      %10 = sbr.rel (0) target = $region5
    $region4: #{tpu_custom_call.1} parent=1 // pred_region
      %s12 = ssub.s32 128, 128
      %13 = vsyncadd [#allocation3], %s12
      %s15 = sshll.u32 [#allocation2], 4
      %s16 = int_to_ptr.vmem [resolvable:$true] %s15
      %18 = dma.hbm_to_vmem [thread:$0]  %s0, 128, %s16, [#allocation3]
    $region5: #{tpu_custom_call.1} parent=1 // pred_fallthru
      _
    // Predicated region
    $region6: #{tpu_custom_call.1} parent=1 // pred_check
      _
    $region7: #{tpu_custom_call.1} parent=1 // pred_check_branch
      %20 = sbr.rel (0) target = $region9
    $region8: #{tpu_custom_call.1} parent=1 // pred_region
      %s22 = ssub.s32 5120, 5120
      %23 = vsyncadd [#allocation5], %s22
      %s24 = sshll.u32 [#allocation4], 4
      %s25 = int_to_ptr.vmem [resolvable:$true] %s24
      %30 = dma.hbm_to_vmem [thread:$0]  %s1, 5120, %s25, [#allocation5], 512, 512, 32
    $region9: #{tpu_custom_call.1} parent=1 // pred_fallthru
      _
    // Predicated region
    $region10: #{tpu_custom_call.1} parent=1 // pred_check
      _
    $region11: #{tpu_custom_call.1} parent=1 // pred_check_branch
      %32 = sbr.rel (0) target = $region13
    $region12: #{tpu_custom_call.1} parent=1 // pred_region
      %33 = dma.done [#allocation3], 128
    $region13: #{tpu_custom_call.1} parent=1 // pred_fallthru
      _
    // Predicated region
    $region14: #{tpu_custom_call.1} parent=1 // pred_check
      _
    $region15: #{tpu_custom_call.1} parent=1 // pred_check_branch
      %35 = sbr.rel (0) target = $region17
    $region16: #{tpu_custom_call.1} parent=1 // pred_region
      %36 = dma.done [#allocation5], 5120
    $region17: #{tpu_custom_call.1} parent=1 // pred_fallthru
      _
    %v38 = vld [vmem:[#allocation2] sm:$0xff]
    %v39 = vld [vmem:[#allocation4 + $0x80] sm:$0xff]
    %v40 = vld [vmem:[#allocation4 + $0x88] sm:$0xff]
    %v41 = vld [vmem:[#allocation4 + $0x90] sm:$0xff]
    %v42 = vld [vmem:[#allocation4 + $0x98] sm:$0xff]
    %v43 = vld [vmem:[#allocation4 + $0xa0] sm:$0xff]
    %v44 = vld [vmem:[#allocation4 + $0xa8] sm:$0xff]
    %v45 = vld [vmem:[#allocation4 + $0xb0] sm:$0xff]
    %v46 = vld [vmem:[#allocation4 + $0xb8] sm:$0xff]
    %v47 = vld [vmem:[#allocation4 + $0xc0] sm:$0xff]
    %v48 = vld [vmem:[#allocation4 + $0xc8] sm:$0xff]
    %v49 = vld [vmem:[#allocation4 + $0xd0] sm:$0xff]
    %v50 = vld [vmem:[#allocation4 + $0xd8] sm:$0xff]
    %v51 = vld [vmem:[#allocation4 + $0xe0] sm:$0xff]
    %v52 = vld [vmem:[#allocation4 + $0xe8] sm:$0xff]
    %v53 = vld [vmem:[#allocation4 + $0xf0] sm:$0xff]
    %v54 = vld [vmem:[#allocation4 + $0xf8] sm:$0xff]
    %v55 = vpack.c.bf16 %v43, %v39
    %v56 = vpack.c.bf16 %v44, %v40
    %v57 = vpack.c.bf16 %v45, %v41
    %v58 = vpack.c.bf16 %v46, %v42
    %v59 = vpack.c.bf16 %v51, %v47
    %v60 = vpack.c.bf16 %v52, %v48
    %v61 = vpack.c.bf16 %v53, %v49
    %v62 = vpack.c.bf16 %v54, %v50
    %v63 = vld [vmem:[#allocation4] sm:$0xff]
    %v64 = vld [vmem:[#allocation4 + $0x20] sm:$0xff]
    %v65 = vld [vmem:[#allocation4 + $0x40] sm:$0xff]
    %v66 = vld [vmem:[#allocation4 + $0x60] sm:$0xff]
    %vm67 = vcmask 261120
    %v69 = vsel %vm67, %v38, 0
    %71 = vmatprep.subr.mxu0 0.0
    %72 = vmatpush1.msra.mxu0 0.0
    %73 = vmatprep.subr.mxu0 0.0
    %74 = vmatpush1.msra.mxu0 0.0
    %75 = vmatprep.subr.mxu0 0.0
    %76 = vmatpush1.msra.mxu0 0.0
    %77 = vmatprep.subr.mxu0 0.0
    %78 = vmatpush1.msra.mxu0 0.0
    %79 = vmatprep.subr.mxu0 0.0
    %80 = vmatpush1.msra.mxu0 0.0
    %81 = vmatprep.subr.mxu0 0.0
    %82 = vmatpush1.msra.mxu0 0.0
    %83 = vmatprep.subr.mxu0 0.0
    %84 = vmatpush1.msra.mxu0 0.0
    %85 = vmatprep.subr.mxu0 0.0
    %86 = vmatpush1.msra.mxu0 0.0
    %87 = vmatprep.subr.mxu0 0.0
    %88 = vmatpush1.msra.mxu0 0.0
    %89 = vmatprep.subr.mxu0 0.0
    %90 = vmatpush1.msra.mxu0 0.0
    %91 = vmatprep.subr.mxu0 0.0
    %92 = vmatpush1.msra.mxu0 0.0
    %93 = vmatprep.subr.mxu0 0.0
    %94 = vmatpush1.msra.mxu0 0.0
    %95 = vmatprep.subr.mxu0 0.0
    %96 = vmatpush1.msra.mxu0 %v66
    %97 = vmatprep.subr.mxu0 0.0
    %98 = vmatpush1.msra.mxu0 %v65
    %99 = vmatprep.subr.mxu0 0.0
    %100 = vmatpush1.msra.mxu0 %v64
    %101 = vmatprep.subr.mxu0 0.0
    %102 = vmatpush1.msra.mxu0 %v63
    %103 = vmatprep.subr.mxu0 0.0
    %104 = vmatpush2.msra.mxu0 0.0
    %105 = vmatprep.subr.mxu0 0.0
    %106 = vmatpush2.msra.mxu0 0.0
    %107 = vmatprep.subr.mxu0 0.0
    %108 = vmatpush2.msra.mxu0 0.0
    %109 = vmatprep.subr.mxu0 0.0
    %110 = vmatpush2.msra.mxu0 0.0
    %111 = vmatprep.subr.mxu0 0.0
    %112 = vmatpush2.msra.mxu0 0.0
    %113 = vmatprep.subr.mxu0 0.0
    %114 = vmatpush2.msra.mxu0 0.0
    %115 = vmatprep.subr.mxu0 0.0
    %116 = vmatpush2.msra.mxu0 0.0
    %117 = vmatprep.subr.mxu0 0.0
    %118 = vmatpush2.msra.mxu0 0.0
    %119 = vmatprep.subr.mxu0 0.0
    %120 = vmatpush2.msra.mxu0 0.0
    %121 = vmatprep.subr.mxu0 0.0
    %122 = vmatpush2.msra.mxu0 0.0
    %123 = vmatprep.subr.mxu0 0.0
    %124 = vmatpush2.msra.mxu0 0.0
    %125 = vmatprep.subr.mxu0 0.0
    %126 = vmatpush2.msra.mxu0 0.0
    %127 = vmatprep.subr.mxu0 0.0
    %128 = vmatpush2.msra.mxu0 0.0
    %129 = vmatprep.subr.mxu0 0.0
    %130 = vmatpush2.msra.mxu0 0.0
    %131 = vmatprep.subr.mxu0 0.0
    %132 = vmatpush2.msra.mxu0 0.0
    %133 = vmatprep.subr.mxu0 0.0
    %134 = vmatpush2.msra.mxu0 0.0
    %135 = vmatprep.mubr.f32.mxu0 0.0
    %136 = vmatmul.mubr.f32.gmra.mxu0 %v69
    %v137 = vpop.f32.mrf.mxu0
    %v138 = vadd.f32 0.0, %v137
    %v139 = vpop.f32.mrf.mxu0
    %140 = vdwg.mxu0
    %v141 = vmul.f32 %v138, %v38
    %v142 = vsel %vm67, %v141, 0.0
    %143 = vadd.xlane.f32.xlu0 %v142
    %v144 = vpop.xlane.xlu0 %143
    %v145 = vadd.f32 %v38, %v144
    %v146 = vsel %vm67, %v145, 0.0
    %v147 = vrot.slane %v146, 4
    %v148 = vadd.f32 %v146, %v147
    %v149 = vrot.slane %v148, 2
    %v150 = vadd.f32 %v148, %v149
    %v151 = vrot.slane %v150, 1
    %v152 = vadd.f32 %v150, %v151
    %v153 = vmul.f32 %v152, 0.125
    %v154 = vmul.f32 %v145, %v145
    %v155 = vsel %vm67, %v154, 0.0
    %v156 = vrot.slane %v155, 4
    %v157 = vadd.f32 %v155, %v156
    %v158 = vrot.slane %v157, 2
    %v159 = vadd.f32 %v157, %v158
    %v160 = vrot.slane %v159, 1
    %v161 = vadd.f32 %v159, %v160
    %v162 = vmul.f32 %v161, 0.125
    %v163 = vmul.f32 %v153, %v153
    %v164 = vsub.f32 %v162, %v163
    %v165 = vsub.f32 %v145, %v153
    %v166 = vadd.f32 %v164, 1e-05
    %v167 = vrsqrt.pop %v166
    %v168 = vmul.f32 %v165, %v167
    %v169 = vpack.c.bf16 %v168, %v168
    %v170 = vld [vmem:[#allocation4 + $0x100] sm:$0xff]
    %v171 = vld [vmem:[#allocation4 + $0x108] sm:$0xff]
    %v172 = vld [vmem:[#allocation4 + $0x110] sm:$0xff]
    %v173 = vld [vmem:[#allocation4 + $0x118] sm:$0xff]
    %v175 = vsel %vm67, %v169, 0
    %177 = vmatprep.subr.bf16.mxu0 0
    %178 = vmatpush1.bf16.msra.mxu0 0
    %179 = vmatprep.subr.bf16.mxu0 0
    %180 = vmatpush1.bf16.msra.mxu0 0
    %181 = vmatprep.subr.bf16.mxu0 0
    %182 = vmatpush1.bf16.msra.mxu0 0
    %183 = vmatprep.subr.bf16.mxu0 0
    %184 = vmatpush1.bf16.msra.mxu0 0
    %185 = vmatprep.subr.bf16.mxu0 0
    %186 = vmatpush1.bf16.msra.mxu0 0
    %187 = vmatprep.subr.bf16.mxu0 0
    %188 = vmatpush1.bf16.msra.mxu0 0
    %189 = vmatprep.subr.bf16.mxu0 %v60
    %190 = vmatpush1.bf16.msra.mxu0 %v59
    %191 = vmatprep.subr.bf16.mxu0 %v56
    %192 = vmatpush1.bf16.msra.mxu0 %v55
    %193 = vmatprep.subr.bf16.mxu0 0
    %194 = vmatpush2.bf16.msra.mxu0 0
    %195 = vmatprep.subr.bf16.mxu0 0
    %196 = vmatpush2.bf16.msra.mxu0 0
    %197 = vmatprep.subr.bf16.mxu0 0
    %198 = vmatpush2.bf16.msra.mxu0 0
    %199 = vmatprep.subr.bf16.mxu0 0
    %200 = vmatpush2.bf16.msra.mxu0 0
    %201 = vmatprep.subr.bf16.mxu0 0
    %202 = vmatpush2.bf16.msra.mxu0 0
    %203 = vmatprep.subr.bf16.mxu0 0
    %204 = vmatpush2.bf16.msra.mxu0 0
    %205 = vmatprep.subr.bf16.mxu0 0
    %206 = vmatpush2.bf16.msra.mxu0 0
    %207 = vmatprep.subr.bf16.mxu0 0
    %208 = vmatpush2.bf16.msra.mxu0 0
    %209 = vmatprep.mubr.bf16.mxu0 0
    %210 = vmatmul.mubr.bf16.gmra.mxu0 %v175
    %v211 = vpop.f32.mrf.mxu0
    %v212 = vadd.f32 %v170, %v211
    %v213 = vpop.f32.mrf.mxu0
    %v214 = vadd.f32 %v171, %v213
    %v215 = vpop.f32.mrf.mxu0
    %v216 = vpop.f32.mrf.mxu0
    %217 = vdwg.mxu0
    %218 = vmatprep.subr.bf16.mxu0 0
    %219 = vmatpush1.bf16.msra.mxu0 0
    %220 = vmatprep.subr.bf16.mxu0 0
    %221 = vmatpush1.bf16.msra.mxu0 0
    %222 = vmatprep.subr.bf16.mxu0 0
    %223 = vmatpush1.bf16.msra.mxu0 0
    %224 = vmatprep.subr.bf16.mxu0 0
    %225 = vmatpush1.bf16.msra.mxu0 0
    %226 = vmatprep.subr.bf16.mxu0 0
    %227 = vmatpush1.bf16.msra.mxu0 0
    %228 = vmatprep.subr.bf16.mxu0 0
    %229 = vmatpush1.bf16.msra.mxu0 0
    %230 = vmatprep.subr.bf16.mxu0 %v62
    %231 = vmatpush1.bf16.msra.mxu0 %v61
    %232 = vmatprep.subr.bf16.mxu0 %v58
    %233 = vmatpush1.bf16.msra.mxu0 %v57
    %234 = vmatprep.subr.bf16.mxu0 0
    %235 = vmatpush2.bf16.msra.mxu0 0
    %236 = vmatprep.subr.bf16.mxu0 0
    %237 = vmatpush2.bf16.msra.mxu0 0
    %238 = vmatprep.subr.bf16.mxu0 0
    %239 = vmatpush2.bf16.msra.mxu0 0
    %240 = vmatprep.subr.bf16.mxu0 0
    %241 = vmatpush2.bf16.msra.mxu0 0
    %242 = vmatprep.subr.bf16.mxu0 0
    %243 = vmatpush2.bf16.msra.mxu0 0
    %244 = vmatprep.subr.bf16.mxu0 0
    %245 = vmatpush2.bf16.msra.mxu0 0
    %246 = vmatprep.subr.bf16.mxu0 0
    %247 = vmatpush2.bf16.msra.mxu0 0
    %248 = vmatprep.subr.bf16.mxu0 0
    %249 = vmatpush2.bf16.msra.mxu0 0
    %250 = vmatprep.mubr.bf16.mxu0 0
    %251 = vmatmul.mubr.bf16.gmra.mxu0 %v175
    %v252 = vpop.f32.mrf.mxu0
    %v253 = vadd.f32 %v172, %v252
    %v254 = vpop.f32.mrf.mxu0
    %v255 = vadd.f32 %v173, %v254
    %v256 = vpop.f32.mrf.mxu0
    %v257 = vpop.f32.mrf.mxu0
    %258 = vdwg.mxu0
    %v259 = vmul.f32 %v212, 0.5
    %v260 = vmul.f32 %v214, 0.5
    %v261 = vmul.f32 %v253, 0.5
    %v262 = vmul.f32 %v255, 0.5
    %v263 = vtanh.pop %v259
    %v264 = vtanh.pop %v260
    %v265 = vtanh.pop %v261
    %v266 = vtanh.pop %v262
    %v267 = vmul.f32 %v263, 0.5
    %v268 = vmul.f32 %v264, 0.5
    %v269 = vmul.f32 %v265, 0.5
    %v270 = vmul.f32 %v266, 0.5
    %v271 = vadd.f32 %v267, 0.5
    %v272 = vadd.f32 %v268, 0.5
    %v273 = vadd.f32 %v269, 0.5
    %v274 = vadd.f32 %v270, 0.5
    %v275 = vld [vmem:[#allocation4 + $0x120] sm:$0xff]
    %v276 = vld [vmem:[#allocation4 + $0x128] sm:$0xff]
    %v277 = vld [vmem:[#allocation4 + $0x130] sm:$0xff]
    %v278 = vld [vmem:[#allocation4 + $0x138] sm:$0xff]
    %v279 = vmul.f32 %v271, %v275
    %v280 = vmul.f32 %v272, %v276
    %v281 = vmul.f32 %v273, %v277
    %v282 = vmul.f32 %v274, %v278
    %v283 = vadd.f32 %v279, %v280
    %v284 = vadd.f32 %v283, %v281
    %v285 = vadd.f32 %v284, %v282
    %286 = vadd.xlane.f32.xlu0 %v285
    %v287 = vpop.xlane.xlu0 %286
    %v288 = vand.u32 2147483647, %v287
    %vm289 = vcmask 7168
    %290 = vst.msk [vmem:[%s2] sm:$0xff] %vm289, %v288
    // Predicated region
    $region18: #{tpu_custom_call.1} parent=1 // pred_check
      _
    $region19: #{tpu_custom_call.1} parent=1 // pred_check_branch
      %292 = sbr.rel (0) target = $region21
    $region20: #{tpu_custom_call.1} parent=1 // pred_region
      _
    $region21: #{tpu_custom_call.1} parent=1 // pred_fallthru
      _
    // Predicated region
    $region22: #{tpu_custom_call.1} parent=1 // pred_check
      _
    $region23: #{tpu_custom_call.1} parent=1 // pred_check_branch
      %294 = sbr.rel (0) target = $region25
    $region24: #{tpu_custom_call.1} parent=1 // pred_region
      _
    $region25: #{tpu_custom_call.1} parent=1 // pred_fallthru
      _
    %295 = vsyncpa [#allocation3], 1
    %296 = vsyncpa [#allocation5], 1

</llo_original>
